<compile_context>
chip_gen: v5e
topology: v5e:2x2
jax: 0.10.0
libtpu: 0.0.40
codegen_flags: <defaults>
</compile_context>

<pallas_src>
import functools

import jax
import jax.numpy as jnp
from jax.experimental import pallas as pl
from jax.experimental.pallas import tpu as pltpu

LN_EPS = 1e-12  # config.classifier_layer_norm_eps


def _round_up(x, m):
    return (x + m - 1) // m * m


def _cdiv(a, b):
    return (a + b - 1) // b


def _layernorm_no_affine(x, eps):
    # nn.LayerNorm(..., elementwise_affine=False): biased variance over last dim (f32).
    mu = jnp.mean(x, axis=-1, keepdims=True)
    var = jnp.mean(jnp.square(x - mu), axis=-1, keepdims=True)
    return (x - mu) * jax.lax.rsqrt(var + eps)


def _gelu(x, approx):
    if approx:
        # tanh approximation: the transcendental runs on the EUP slot (free next to VALU).
        c = jnp.float32(0.7978845608028654)  # sqrt(2/pi)
        return 0.5 * x * (1.0 + jnp.tanh(c * (x + 0.044715 * x * x * x)))
    # nn.GELU() default (exact, erf-based) -> bit-parity with PyTorch.
    return 0.5 * x * (1.0 + jax.lax.erf(x * jnp.float32(0.7071067811865476)))


def _default_vmem_budget():
    # Generation-aware budget: ~80% of per-core VMEM (v7x: 64 MiB -> ~51 MiB,
    # v5e/v6e: 128 MiB -> ~102 MiB).
    try:
        cap = int(pltpu.get_tpu_info().vmem_capacity_bytes)
    except Exception:
        cap = 128 << 20
    return int(cap * 0.8)


@functools.lru_cache(maxsize=None)
def _single_buffer_supported():
    """One-time probe: does this jax support pipeline_mode=pl.Buffered(1)?

    Probing a tiny dummy kernel keeps the real kernel compile unguarded, so genuine
    compile/VMEM/lowering errors of the classifier kernel are never swallowed.
    """
    if not hasattr(pl, "Buffered"):
        return False
    try:
        spec = pl.BlockSpec((8, 128), lambda i: (0, 0), pipeline_mode=pl.Buffered(1))
    except TypeError:
        return False

    def _k(x_ref, o_ref):
        o_ref[...] = x_ref[...]

    try:
        out = pl.pallas_call(
            _k,
            out_shape=jax.ShapeDtypeStruct((8, 128), jnp.float32),
            grid=(1,),
            in_specs=[spec],
            out_specs=pl.BlockSpec((8, 128), lambda i: (0, 0)),
        )(jnp.zeros((8, 128), jnp.float32))
        jax.block_until_ready(out)
        return True
    except Exception:
        return False


def classifier_head_kernel(x_ref, w1_ref, b1_ref, w2_ref, b2_ref, o_ref, *,
                           eps, gelu_approx):
    # LayerNorm math stays f32 regardless of the streamed / matmul dtype.
    x = x_ref[...].astype(jnp.float32)

    # LayerNorm #1 (no affine)
    h = _layernorm_no_affine(x, eps)

    # Linear(hidden -> hidden) + bias, f32 accumulation on the MXU.
    h = jnp.dot(h.astype(w1_ref.dtype), w1_ref[...],
                preferred_element_type=jnp.float32)
    h = h + b1_ref[...]

    # GELU (tanh approx by default; exact erf in parity mode)
    h = _gelu(h, gelu_approx)

    # LayerNorm #2 (no affine)
    h = _layernorm_no_affine(h, eps)

    # Dropout: module evaluated in inference mode -> identity.
    # TODO(synk): training-mode dropout (pltpu.prng_seed / prng_random_bits) not implemented.

    # Linear(hidden -> num_labels_padded) + bias (padded columns are exactly zero).
    out = jnp.dot(h.astype(w2_ref.dtype), w2_ref[...],
                  preferred_element_type=jnp.float32)
    out = out + b2_ref[...]
    o_ref[...] = out.astype(o_ref.dtype)


def prepare_params(w1, b1, w2, b2, *, matmul_dtype=jnp.bfloat16):
    """One-time weight prep (call once; reuse across forward calls).

    Pads num_labels to a full 128-lane tile (lane-dense stores, full MXU output lanes)
    and casts matmul operands. Hoisted out of the per-call wrapper so the pad/cast is
    not re-materialized in HBM on every forward under jit.
    """
    H = w1.shape[0]
    L = w2.shape[1]
    matmul_dtype = jnp.dtype(matmul_dtype)
    L_pad = _round_up(max(L, 1), 128)

    w1_m = w1.astype(matmul_dtype)
    w2_m = jnp.zeros((H, L_pad), matmul_dtype).at[:, :L].set(w2.astype(matmul_dtype))
    b1_2d = b1.reshape(1, H).astype(jnp.float32)
    b2_2d = jnp.zeros((1, L_pad), jnp.float32).at[0, :L].set(b2.astype(jnp.float32))

    return {"w1": w1_m, "b1": b1_2d, "w2": w2_m, "b2": b2_2d,
            "num_labels": L, "matmul_dtype": matmul_dtype}


def classifier_head(x, params, *, eps=LN_EPS, gelu_approx=True, tile_b=None,
                    vmem_budget_bytes=None, out_dtype=None):
    """Fused classifier head forward. `params` comes from prepare_params()."""
    w1, b1, w2, b2 = params["w1"], params["b1"], params["w2"], params["b2"]
    L = params["num_labels"]
    matmul_dtype = params["matmul_dtype"]

    B, H = x.shape
    L_pad = w2.shape[1]
    out_dtype = jnp.dtype(out_dtype or x.dtype)

    # Stream x in the matmul dtype (halves the dominant per-step DMA in bf16 mode);
    # LN1 statistics are still computed in f32 inside the kernel.
    x_in = x if x.dtype == matmul_dtype else x.astype(matmul_dtype)
    x_itemsize = x_in.dtype.itemsize
    sublane = 16 if x_itemsize == 2 else 8

    if vmem_budget_bytes is None:
        vmem_budget_bytes = _default_vmem_budget()

    single_buffer = _single_buffer_supported()
    w_buf = 1 if single_buffer else 2
    w_bytes = (w1.size * w1.dtype.itemsize + w2.size * w2.dtype.itemsize
               + b1.size * 4 + b2.size * 4)

    # TODO(synk): for H large enough that W1 alone blows the v7x 64 MiB budget
    # (bf16 H >= ~4096), add an inner K-tiled 'arbitrary' grid axis with an f32
    # VMEM accumulator for the first matmul instead of keeping W1 fully resident.

    # ---- batch tile auto-sizing against the VMEM budget --------------------
    if tile_b is None:
        bytes_per_row = (2 * (H * x_itemsize + L_pad * out_dtype.itemsize)  # dbl-buffered x/out
                         + 4 * H * 4)                                       # fused-chain f32 intermediates
        avail = vmem_budget_bytes - w_buf * w_bytes - (4 << 20)
        avail = max(avail, bytes_per_row * sublane)
        tile_b = max(sublane, min(512, (avail // bytes_per_row) // sublane * sublane))
    tile_b = max(sublane, _round_up(min(int(tile_b), max(B, 1)), sublane))

    # Balance tiles (last tile pads < sublane rows) and keep >=2 tiles when B allows,
    # so the "parallel" batch axis can shard across both v7x TensorCores.
    n_tiles = _cdiv(B, tile_b)
    if B > sublane:
        n_tiles = max(n_tiles, 2)
    tile_b = _round_up(_cdiv(B, n_tiles), sublane)
    B_pad = _round_up(B, tile_b)
    grid = B_pad // tile_b

    # Pad the batch to a tile multiple; padded rows produce finite garbage-free zeros
    # through the LN chain and are sliced off below.
    x_p = x_in if B_pad == B else jnp.zeros((B_pad, H), x_in.dtype).at[:B].set(x_in)

    stream_bytes = 2 * tile_b * (H * x_itemsize + L_pad * out_dtype.itemsize)
    interm_bytes = 4 * tile_b * H * 4
    vmem_limit = int(min(max(w_buf * w_bytes + stream_bytes + interm_bytes + (4 << 20),
                             16 << 20),
                         vmem_budget_bytes))

    def w_spec(shape):
        # Weights/biases are grid-invariant; single-buffer them when supported to
        # halve their VMEM footprint (constant index_map -> no re-DMA either way).
        if single_buffer:
            return pl.BlockSpec(shape, lambda i: (0, 0), pipeline_mode=pl.Buffered(1))
        return pl.BlockSpec(shape, lambda i: (0, 0))

    kernel = functools.partial(classifier_head_kernel, eps=eps, gelu_approx=gelu_approx)

    out = pl.pallas_call(
        kernel,
        out_shape=jax.ShapeDtypeStruct((B_pad, L_pad), out_dtype),
        grid_spec=pltpu.PrefetchScalarGridSpec(
            num_scalar_prefetch=0,
            grid=(grid,),
            in_specs=[
                pl.BlockSpec((tile_b, H), lambda i: (i, 0)),  # x tile (pipelined)
                w_spec((H, H)),                               # W1 (in, out), resident
                w_spec((1, H)),                               # b1
                w_spec((H, L_pad)),                           # W2 (in, out_pad), resident
                w_spec((1, L_pad)),                           # b2
            ],
            out_specs=pl.BlockSpec((tile_b, L_pad), lambda i: (i, 0)),
        ),
        compiler_params=pltpu.CompilerParams(
            dimension_semantics=("parallel",),   # batch tiles shard across TCs (v7x)
            vmem_limit_bytes=vmem_limit,
        ),
    )(x_p, w1, b1, w2, b2)

    return out[:B, :L]


def reference(x, w1, b1, w2, b2, eps=LN_EPS, gelu_approx=True):
    h = _layernorm_no_affine(x.astype(jnp.float32), eps)
    h = h @ w1 + b1
    h = _gelu(h, gelu_approx)
    h = _layernorm_no_affine(h, eps)
    return h @ w2 + b2


if __name__ == "__main__":
    # Small config consistent with the module's forward:
    #   hidden_size=32, num_labels=4, batch=8 (pooled embeddings, shape (B, H))
    B, H, L = 8, 32, 4

    key = jax.random.PRNGKey(0)
    kx, kw1, kb1, kw2, kb2 = jax.random.split(key, 5)

    x = jax.random.normal(kx, (B, H), dtype=jnp.float32)
    # Deterministic synthetic parameters (Linear weights stored as (in, out)).
    w1 = 0.02 * jax.random.normal(kw1, (H, H), dtype=jnp.float32)
    b1 = 0.01 * jax.random.normal(kb1, (H,), dtype=jnp.float32)
    w2 = 0.02 * jax.random.normal(kw2, (H, L), dtype=jnp.float32)
    b2 = 0.01 * jax.random.normal(kb2, (L,), dtype=jnp.float32)

    # Fast path (default): bf16 matmul operands + tanh GELU.
    params_fast = prepare_params(w1, b1, w2, b2, matmul_dtype=jnp.bfloat16)
    out_fast = jax.block_until_ready(classifier_head(x, params_fast))
    ref_fast = reference(x, w1, b1, w2, b2, gelu_approx=True)
    assert out_fast.shape == (B, L)
    assert jnp.allclose(out_fast, ref_fast, atol=3e-2, rtol=3e-2), "bf16 path mismatch"

    # Parity path: f32 matmuls + exact erf GELU (matches the PyTorch module bit-for-bit
    # semantics of LayerNorm(eps=1e-12) -> Linear -> GELU -> LayerNorm -> Dropout(eval) -> Linear).
    params_exact = prepare_params(w1, b1, w2, b2, matmul_dtype=jnp.float32)
    out_exact = jax.block_until_ready(
        classifier_head(x, params_exact, gelu_approx=False))
    ref_exact = reference(x, w1, b1, w2, b2, gelu_approx=False)
    assert out_exact.shape == (B, L)
    assert jnp.allclose(out_exact, ref_exact, atol=1e-5, rtol=1e-5), "parity path mismatch"

    print("KERNEL_OK")
</pallas_src>

<mosaic_0001>
module attributes {stable_mosaic.version = 11 : i64} {
  func.func @_k(%arg0: i32, %arg1: memref<8x128xf32, #tpu.memory_space<vmem>>, %arg2: memref<8x128xf32, #tpu.memory_space<vmem>>) attributes {dimension_semantics = [#tpu.dimension_semantics<arbitrary>], iteration_bounds = array<i64: 1>, scalar_prefetch = 0 : i64, scratch_operands = 0 : i64, tpu.core_type = #tpu.core_type<tc>, window_params = [{pipeline_mode = #tpu.pipeline_mode<synchronous>, transform_indices = @transform_0, window_bounds = array<i64: 8, 128>}, {pipeline_mode = #tpu.pipeline_mode<synchronous>, transform_indices = @transform_1, window_bounds = array<i64: 8, 128>}]} {
    %c0 = arith.constant 0 : index
    %c0_0 = arith.constant 0 : index
    %0 = vector.load %arg1[%c0, %c0_0] : memref<8x128xf32, #tpu.memory_space<vmem>>, vector<8x128xf32>
    %c0_1 = arith.constant 0 : index
    %c0_2 = arith.constant 0 : index
    %1 = vector.load %arg2[%c0_1, %c0_2] : memref<8x128xf32, #tpu.memory_space<vmem>>, vector<8x128xf32>
    tpu.vector_store %arg2[%c0_1, %c0_2], %0 {strides = array<i32>} : memref<8x128xf32, #tpu.memory_space<vmem>>, vector<8x128xf32>,
    return
  }
  func.func @transform_0(%arg0: i32) -> (i32, i32) {
    %c0_i32 = arith.constant 0 : i32
    %c0_i32_0 = arith.constant 0 : i32
    %c0_i32_1 = arith.constant 0 : i32
    return %c0_i32, %c0_i32_0 : i32, i32
  }
  func.func @transform_1(%arg0: i32) -> (i32, i32) {
    %c0_i32 = arith.constant 0 : i32
    %c0_i32_0 = arith.constant 0 : i32
    %c0_i32_1 = arith.constant 0 : i32
    return %c0_i32, %c0_i32_0 : i32, i32
  }
}

module attributes {stable_mosaic.version = 11 : i64} {
  func.func @classifier_head_kernel(%arg0: i32, %arg1: memref<16x32xbf16, #tpu.memory_space<vmem>>, %arg2: memref<32x32xbf16, #tpu.memory_space<vmem>>, %arg3: memref<1x32xf32, #tpu.memory_space<vmem>>, %arg4: memref<32x128xbf16, #tpu.memory_space<vmem>>, %arg5: memref<1x128xf32, #tpu.memory_space<vmem>>, %arg6: memref<16x128xf32, #tpu.memory_space<vmem>>) attributes {dimension_semantics = [#tpu.dimension_semantics<parallel>], iteration_bounds = array<i64: 1>, scalar_prefetch = 0 : i64, scratch_operands = 0 : i64, tpu.core_type = #tpu.core_type<tc>, window_params = [{transform_indices = @transform_0, window_bounds = array<i64: 16, 32>}, {pipeline_mode = #tpu.pipeline_mode<synchronous>, transform_indices = @transform_1, window_bounds = array<i64: 32, 32>}, {pipeline_mode = #tpu.pipeline_mode<synchronous>, transform_indices = @transform_2, window_bounds = array<i64: 1, 32>}, {pipeline_mode = #tpu.pipeline_mode<synchronous>, transform_indices = @transform_3, window_bounds = array<i64: 32, 128>}, {pipeline_mode = #tpu.pipeline_mode<synchronous>, transform_indices = @transform_4, window_bounds = array<i64: 1, 128>}, {transform_indices = @transform_5, window_bounds = array<i64: 16, 128>}]} {
    %c0 = arith.constant 0 : index
    %c0_0 = arith.constant 0 : index
    %0 = vector.load %arg1[%c0, %c0_0] : memref<16x32xbf16, #tpu.memory_space<vmem>>, vector<16x32xbf16>
    %1 = arith.extf %0 : vector<16x32xbf16> to vector<16x32xf32>
    %cst = arith.constant dense<0.000000e+00> : vector<16xf32>
    %2 = vector.multi_reduction <add>, %1, %cst [1] : vector<16x32xf32> to vector<16xf32>
    %3 = vector.shape_cast %2 : vector<16xf32> to vector<16x1xf32>
    %cst_1 = arith.constant 3.200000e+01 : f32
    %4 = vector.broadcast %cst_1 : f32 to vector<16x1xf32>
    %5 = arith.divf %3, %4 : vector<16x1xf32>
    %6 = vector.broadcast %5 : vector<16x1xf32> to vector<16x32xf32>
    %7 = arith.subf %1, %6 : vector<16x32xf32>
    %8 = arith.mulf %7, %7 : vector<16x32xf32>
    %cst_2 = arith.constant dense<0.000000e+00> : vector<16xf32>
    %9 = vector.multi_reduction <add>, %8, %cst_2 [1] : vector<16x32xf32> to vector<16xf32>
    %10 = vector.shape_cast %9 : vector<16xf32> to vector<16x1xf32>
    %cst_3 = arith.constant 3.200000e+01 : f32
    %11 = vector.broadcast %cst_3 : f32 to vector<16x1xf32>
    %12 = arith.divf %10, %11 : vector<16x1xf32>
    %13 = vector.broadcast %5 : vector<16x1xf32> to vector<16x32xf32>
    %14 = arith.subf %1, %13 : vector<16x32xf32>
    %cst_4 = arith.constant 9.99999996E-13 : f32
    %15 = vector.broadcast %cst_4 : f32 to vector<16x1xf32>
    %16 = arith.addf %12, %15 : vector<16x1xf32>
    %17 = math.rsqrt %16 : vector<16x1xf32>
    %18 = vector.broadcast %17 : vector<16x1xf32> to vector<16x32xf32>
    %19 = arith.mulf %14, %18 : vector<16x32xf32>
    %20 = arith.truncf %19 : vector<16x32xf32> to vector<16x32xbf16>
    %c0_5 = arith.constant 0 : index
    %c0_6 = arith.constant 0 : index
    %21 = vector.load %arg2[%c0_5, %c0_6] : memref<32x32xbf16, #tpu.memory_space<vmem>>, vector<32x32xbf16>
    %cst_7 = arith.constant dense<0.000000e+00> : vector<16x32xf32>
    %22 = tpu.matmul %20, %21, %cst_7 {dimension_numbers = #tpu.dot_dimension_numbers<[1], [0], [0], [1], [0, 0, 1, 1], [], []>} : vector<16x32xbf16>, vector<32x32xbf16>, vector<16x32xf32> -> vector<16x32xf32>
    %c0_8 = arith.constant 0 : index
    %c0_9 = arith.constant 0 : index
    %23 = vector.load %arg3[%c0_8, %c0_9] : memref<1x32xf32, #tpu.memory_space<vmem>>, vector<1x32xf32>
    %24 = vector.broadcast %23 : vector<1x32xf32> to vector<16x32xf32>
    %25 = arith.addf %22, %24 : vector<16x32xf32>
    %cst_10 = arith.constant 5.000000e-01 : f32
    %26 = vector.broadcast %cst_10 : f32 to vector<16x32xf32>
    %27 = arith.mulf %26, %25 : vector<16x32xf32>
    %cst_11 = arith.constant 4.471500e-02 : f32
    %28 = vector.broadcast %cst_11 : f32 to vector<16x32xf32>
    %29 = arith.mulf %28, %25 : vector<16x32xf32>
    %30 = arith.mulf %29, %25 : vector<16x32xf32>
    %31 = arith.mulf %30, %25 : vector<16x32xf32>
    %32 = arith.addf %25, %31 : vector<16x32xf32>
    %cst_12 = arith.constant 0.797884583 : f32
    %33 = vector.broadcast %cst_12 : f32 to vector<16x32xf32>
    %34 = arith.mulf %33, %32 : vector<16x32xf32>
    %35 = math.tanh %34 : vector<16x32xf32>
    %cst_13 = arith.constant 1.000000e+00 : f32
    %36 = vector.broadcast %cst_13 : f32 to vector<16x32xf32>
    %37 = arith.addf %36, %35 : vector<16x32xf32>
    %38 = arith.mulf %27, %37 : vector<16x32xf32>
    %cst_14 = arith.constant dense<0.000000e+00> : vector<16xf32>
    %39 = vector.multi_reduction <add>, %38, %cst_14 [1] : vector<16x32xf32> to vector<16xf32>
    %40 = vector.shape_cast %39 : vector<16xf32> to vector<16x1xf32>
    %cst_15 = arith.constant 3.200000e+01 : f32
    %41 = vector.broadcast %cst_15 : f32 to vector<16x1xf32>
    %42 = arith.divf %40, %41 : vector<16x1xf32>
    %43 = vector.broadcast %42 : vector<16x1xf32> to vector<16x32xf32>
    %44 = arith.subf %38, %43 : vector<16x32xf32>
    %45 = arith.mulf %44, %44 : vector<16x32xf32>
    %cst_16 = arith.constant dense<0.000000e+00> : vector<16xf32>
    %46 = vector.multi_reduction <add>, %45, %cst_16 [1] : vector<16x32xf32> to vector<16xf32>
    %47 = vector.shape_cast %46 : vector<16xf32> to vector<16x1xf32>
    %cst_17 = arith.constant 3.200000e+01 : f32
    %48 = vector.broadcast %cst_17 : f32 to vector<16x1xf32>
    %49 = arith.divf %47, %48 : vector<16x1xf32>
    %50 = vector.broadcast %42 : vector<16x1xf32> to vector<16x32xf32>
    %51 = arith.subf %38, %50 : vector<16x32xf32>
    %cst_18 = arith.constant 9.99999996E-13 : f32
    %52 = vector.broadcast %cst_18 : f32 to vector<16x1xf32>
    %53 = arith.addf %49, %52 : vector<16x1xf32>
    %54 = math.rsqrt %53 : vector<16x1xf32>
    %55 = vector.broadcast %54 : vector<16x1xf32> to vector<16x32xf32>
    %56 = arith.mulf %51, %55 : vector<16x32xf32>
    %57 = arith.truncf %56 : vector<16x32xf32> to vector<16x32xbf16>
    %c0_19 = arith.constant 0 : index
    %c0_20 = arith.constant 0 : index
    %58 = vector.load %arg4[%c0_19, %c0_20] : memref<32x128xbf16, #tpu.memory_space<vmem>>, vector<32x128xbf16>
    %cst_21 = arith.constant dense<0.000000e+00> : vector<16x128xf32>
    %59 = tpu.matmul %57, %58, %cst_21 {dimension_numbers = #tpu.dot_dimension_numbers<[1], [0], [0], [1], [0, 0, 1, 1], [], []>} : vector<16x32xbf16>, vector<32x128xbf16>, vector<16x128xf32> -> vector<16x128xf32>
    %c0_22 = arith.constant 0 : index
    %c0_23 = arith.constant 0 : index
    %60 = vector.load %arg5[%c0_22, %c0_23] : memref<1x128xf32, #tpu.memory_space<vmem>>, vector<1x128xf32>
    %61 = vector.broadcast %60 : vector<1x128xf32> to vector<16x128xf32>
    %62 = arith.addf %59, %61 : vector<16x128xf32>
    %c0_24 = arith.constant 0 : index
    %c0_25 = arith.constant 0 : index
    %63 = vector.load %arg6[%c0_24, %c0_25] : memref<16x128xf32, #tpu.memory_space<vmem>>, vector<16x128xf32>
    tpu.vector_store %arg6[%c0_24, %c0_25], %62 {strides = array<i32>} : memref<16x128xf32, #tpu.memory_space<vmem>>, vector<16x128xf32>,
    return
  }
  func.func @transform_0(%arg0: i32) -> (i32, i32) {
    %c0_i32 = arith.constant 0 : i32
    %c0_i32_0 = arith.constant 0 : i32
    return %arg0, %c0_i32 : i32, i32
  }
  func.func @transform_1(%arg0: i32) -> (i32, i32) {
    %c0_i32 = arith.constant 0 : i32
    %c0_i32_0 = arith.constant 0 : i32
    %c0_i32_1 = arith.constant 0 : i32
    return %c0_i32, %c0_i32_0 : i32, i32
  }
  func.func @transform_2(%arg0: i32) -> (i32, i32) {
    %c0_i32 = arith.constant 0 : i32
    %c0_i32_0 = arith.constant 0 : i32
    %c0_i32_1 = arith.constant 0 : i32
    return %c0_i32, %c0_i32_0 : i32, i32
  }
  func.func @transform_3(%arg0: i32) -> (i32, i32) {
    %c0_i32 = arith.constant 0 : i32
    %c0_i32_0 = arith.constant 0 : i32
    %c0_i32_1 = arith.constant 0 : i32
    return %c0_i32, %c0_i32_0 : i32, i32
  }
  func.func @transform_4(%arg0: i32) -> (i32, i32) {
    %c0_i32 = arith.constant 0 : i32
    %c0_i32_0 = arith.constant 0 : i32
    %c0_i32_1 = arith.constant 0 : i32
    return %c0_i32, %c0_i32_0 : i32, i32
  }
  func.func @transform_5(%arg0: i32) -> (i32, i32) {
    %c0_i32 = arith.constant 0 : i32
    %c0_i32_0 = arith.constant 0 : i32
    return %arg0, %c0_i32 : i32, i32
  }
}

</mosaic_0001>

<llo_original>
// kernel: tpu_custom_call.1
$region0: #{tpu_custom_call.1}
  #allocation0 [shape = 'u32[]', space=smem, size = 0x4, offset = 0x4, fixed_abs, tag = 'smem constant byte address 0x4 - core index']
  #allocation1 [shape = 'u32[72,128]{1,0:T(1,128)}', space=vmem, size = 0x9000, scoped, tag = 'internal scratch']
  %s0 = inlined_call_operand.hbm [shape: f32[8,128], index: 0, kind: input, shape index: {}]
  %s1 = inlined_call_operand.hbm [shape: f32[8,128], index: 1, kind: output, shape index: {}]
  %s2 = sld [smem:[#allocation0]]
  $region18: #{tpu_custom_call.1} parent=0
    _
  %s4 = ssub.s32 1, %s2
  %s5 = scalar_select 0, %s4, %s2
  $region1: #{tpu_custom_call.1} parent=0
    #allocation2 [shape = 'u8[4096]{0}', space=vmem, size = 0x1000, scoped, tag = 'input window, operand 0, single buffered']
    #allocation3 [shape = 's32[1]{0}', space=sflag, size = 0x4, scoped, tag = 'scoped memory for tpu_custom_call.1']
    #allocation4 [shape = 's32[1]{0}', space=sflag, size = 0x4, scoped, tag = 'scoped memory for tpu_custom_call.1']
    #allocation5 [shape = 'u8[4096]{0}', space=vmem, size = 0x1000, scoped, tag = 'output window, operand 0, single buffered']
    %6 = vsyncpa [#allocation3], 0
    %7 = vsyncpa [#allocation4], 0
    // Predicated region
    $region2: #{tpu_custom_call.1} parent=1 // pred_check
      _
    $region3: #{tpu_custom_call.1} parent=1 // pred_check_branch
      %9 = sbr.rel (0) target = $region5
    $region4: #{tpu_custom_call.1} parent=1 // pred_region
      %11 = vsyncadd [#allocation3], 0
      %s13 = sshll.u32 %s0, 4
      %s14 = int_to_ptr.hbm [resolvable:$true] %s13
      %s15 = sshll.u32 [#allocation2], 4
      %s16 = int_to_ptr.vmem [resolvable:$true] %s15
      %18 = dma.hbm_to_vmem [thread:$0]  %s14, 128, %s16, [#allocation3]
    $region5: #{tpu_custom_call.1} parent=1 // pred_fallthru
      _
    // Predicated region
    $region6: #{tpu_custom_call.1} parent=1 // pred_check
      _
    $region7: #{tpu_custom_call.1} parent=1 // pred_check_branch
      %20 = sbr.rel (0) target = $region9
    $region8: #{tpu_custom_call.1} parent=1 // pred_region
      %22 = dma.done [#allocation3], 128
    $region9: #{tpu_custom_call.1} parent=1 // pred_fallthru
      _
    %v23 = vld [vmem:[#allocation2] sm:$0xff]
    %24 = vst [vmem:[#allocation5] sm:$0xff] %v23
    // Predicated region
    $region10: #{tpu_custom_call.1} parent=1 // pred_check
      _
    $region11: #{tpu_custom_call.1} parent=1 // pred_check_branch
      %26 = sbr.rel (0) target = $region13
    $region12: #{tpu_custom_call.1} parent=1 // pred_region
      %28 = vsyncadd [#allocation4], 0
      %s30 = sshll.u32 [#allocation5], 4
      %s31 = int_to_ptr.vmem [resolvable:$true] %s30
      %s32 = sshll.u32 %s1, 4
      %s33 = int_to_ptr.hbm [resolvable:$true] %s32
      %35 = dma.vmem_to_hbm [thread:$0]  %s31, 128, %s33, [#allocation4]
    $region13: #{tpu_custom_call.1} parent=1 // pred_fallthru
      _
    // Predicated region
    $region14: #{tpu_custom_call.1} parent=1 // pred_check
      _
    $region15: #{tpu_custom_call.1} parent=1 // pred_check_branch
      %37 = sbr.rel (0) target = $region17
    $region16: #{tpu_custom_call.1} parent=1 // pred_region
      %39 = dma.done [#allocation4], 128
    $region17: #{tpu_custom_call.1} parent=1 // pred_fallthru
      _
    %40 = vsyncpa [#allocation3], 1
    %41 = vsyncpa [#allocation4], 1

// kernel: tpu_custom_call.1
$region0: #{tpu_custom_call.1}
  #allocation0 [shape = 'u32[]', space=smem, size = 0x4, offset = 0x4, fixed_abs, tag = 'smem constant byte address 0x4 - core index']
  #allocation1 [shape = 'u32[72,128]{1,0:T(1,128)}', space=vmem, size = 0x9000, scoped, tag = 'internal scratch']
  %s0 = inlined_call_operand.hbm [shape: bf16[16,32], index: 0, kind: input, shape index: {}]
  %s1 = inlined_call_operand.hbm [shape: bf16[32,32], index: 1, kind: input, shape index: {}]
  %s2 = inlined_call_operand.vmem [shape: f32[1,32], index: 2, kind: input, shape index: {}]
  %s3 = inlined_call_operand.hbm [shape: bf16[32,128], index: 3, kind: input, shape index: {}]
  %s4 = inlined_call_operand.vmem [shape: f32[1,128], index: 4, kind: input, shape index: {}]
  %s5 = inlined_call_operand.hbm [shape: f32[16,128], index: 5, kind: output, shape index: {}]
  %s6 = sld [smem:[#allocation0]]
  $region42: #{tpu_custom_call.1} parent=0
    _
  %s8 = ssub.s32 1, %s6
  %s9 = scalar_select 0, %s8, %s6
  $region1: #{tpu_custom_call.1} parent=0
    #allocation2 [shape = 'u8[4096]{0}', space=vmem, size = 0x1000, scoped, tag = 'input window, operand 0, single buffered']
    #allocation3 [shape = 's32[1]{0}', space=sflag, size = 0x4, scoped, tag = 'scoped memory for tpu_custom_call.1']
    #allocation4 [shape = 's32[1]{0}', space=sflag, size = 0x4, scoped, tag = 'scoped memory for tpu_custom_call.1']
    #allocation5 [shape = 'u8[8192]{0}', space=vmem, size = 0x2000, scoped, tag = 'input window, operand 1, single buffered']
    #allocation6 [shape = 's32[1]{0}', space=sflag, size = 0x4, scoped, tag = 'scoped memory for tpu_custom_call.1']
    #allocation7 [shape = 'u8[8192]{0}', space=vmem, size = 0x2000, scoped, tag = 'input window, operand 3, single buffered']
    #allocation8 [shape = 'u8[8192]{0}', space=vmem, size = 0x2000, scoped, tag = 'output window, operand 0, single buffered']
    %10 = vsyncpa [#allocation3], 0
    %11 = vsyncpa [#allocation6], 0
    %12 = vsyncpa [#allocation4], 0
    // Predicated region
    $region2: #{tpu_custom_call.1} parent=1 // pred_check
      _
    $region3: #{tpu_custom_call.1} parent=1 // pred_check_branch
      %14 = sbr.rel (0) target = $region5
    $region4: #{tpu_custom_call.1} parent=1 // pred_region
      %16 = vsyncadd [#allocation3], 0
      %s17 = sshll.u32 %s0, 4
      %s18 = int_to_ptr.hbm [resolvable:$true] %s17
      %s19 = sshll.u32 [#allocation2], 4
      %s20 = int_to_ptr.vmem [resolvable:$true] %s19
      %25 = dma.hbm_to_vmem [thread:$0]  %s18, 128, %s20, [#allocation3], 64, 64, 4
    $region5: #{tpu_custom_call.1} parent=1 // pred_fallthru
      _
    // Predicated region
    $region6: #{tpu_custom_call.1} parent=1 // pred_check
      _
    $region7: #{tpu_custom_call.1} parent=1 // pred_check_branch
      %27 = sbr.rel (0) target = $region9
    $region8: #{tpu_custom_call.1} parent=1 // pred_region
      %29 = vsyncadd [#allocation6], 0
      %s30 = sshll.u32 %s1, 4
      %s31 = int_to_ptr.hbm [resolvable:$true] %s30
      %s32 = sshll.u32 [#allocation5], 4
      %s33 = int_to_ptr.vmem [resolvable:$true] %s32
      %38 = dma.hbm_to_vmem [thread:$0]  %s31, 256, %s33, [#allocation6], 64, 64, 4
    $region9: #{tpu_custom_call.1} parent=1 // pred_fallthru
      _
    // Predicated region
    $region10: #{tpu_custom_call.1} parent=1 // pred_check
      _
    $region11: #{tpu_custom_call.1} parent=1 // pred_check_branch
      %40 = sbr.rel (0) target = $region13
    $region12: #{tpu_custom_call.1} parent=1 // pred_region
      _
    $region13: #{tpu_custom_call.1} parent=1 // pred_fallthru
      _
    // Predicated region
    $region14: #{tpu_custom_call.1} parent=1 // pred_check
      _
    $region15: #{tpu_custom_call.1} parent=1 // pred_check_branch
      %42 = sbr.rel (0) target = $region17
    $region16: #{tpu_custom_call.1} parent=1 // pred_region
      %44 = vsyncadd [#allocation6], 0
      %s45 = sshll.u32 %s3, 4
      %s46 = int_to_ptr.hbm [resolvable:$true] %s45
      %s47 = sshll.u32 [#allocation7], 4
      %s48 = int_to_ptr.vmem [resolvable:$true] %s47
      %53 = dma.hbm_to_vmem [thread:$0]  %s46, 256, %s48, [#allocation6], 64, 64, 4
    $region17: #{tpu_custom_call.1} parent=1 // pred_fallthru
      _
    // Predicated region
    $region18: #{tpu_custom_call.1} parent=1 // pred_check
      _
    $region19: #{tpu_custom_call.1} parent=1 // pred_check_branch
      %55 = sbr.rel (0) target = $region21
    $region20: #{tpu_custom_call.1} parent=1 // pred_region
      _
    $region21: #{tpu_custom_call.1} parent=1 // pred_fallthru
      _
    // Predicated region
    $region22: #{tpu_custom_call.1} parent=1 // pred_check
      _
    $region23: #{tpu_custom_call.1} parent=1 // pred_check_branch
      %57 = sbr.rel (0) target = $region25
    $region24: #{tpu_custom_call.1} parent=1 // pred_region
      %59 = dma.done [#allocation3], 128
    $region25: #{tpu_custom_call.1} parent=1 // pred_fallthru
      _
    // Predicated region
    $region26: #{tpu_custom_call.1} parent=1 // pred_check
      _
    $region27: #{tpu_custom_call.1} parent=1 // pred_check_branch
      %61 = sbr.rel (0) target = $region29
    $region28: #{tpu_custom_call.1} parent=1 // pred_region
      %63 = dma.done [#allocation6], 256
    $region29: #{tpu_custom_call.1} parent=1 // pred_fallthru
      _
    // Predicated region
    $region30: #{tpu_custom_call.1} parent=1 // pred_check
      _
    $region31: #{tpu_custom_call.1} parent=1 // pred_check_branch
      %65 = sbr.rel (0) target = $region33
    $region32: #{tpu_custom_call.1} parent=1 // pred_region
      %67 = dma.done [#allocation6], 256
    $region33: #{tpu_custom_call.1} parent=1 // pred_fallthru
      _
    %v69 = vld [vmem:[#allocation2] sm:$0xf]
    %v70 = vld [vmem:[#allocation2 + $0x4] sm:$0xf]
    %v71 = vunpack.c.l.bf16 %v69
    %v72 = vunpack.c.l.bf16 %v70
    %vm73 = vcmask 261120
    %v74 = vsel %vm73, %v71, 0.0
    %75 = vadd.xlane.f32.xlu0 %v74
    %v76 = vpop.xlane.xlu0 %75
    %v77 = vsel %vm73, %v72, 0.0
    %78 = vadd.xlane.f32.xlu0 %v77
    %v79 = vpop.xlane.xlu0 %78
    %v80 = vrcp.pop 32.0
    %v81 = vmul.f32 32.0, %v80
    %v82 = vsub.f32 1.0, %v81
    %v83 = vmul.f32 %v80, %v82
    %v84 = vadd.f32 %v80, %v83
    %vm85 = vweird.f32 %v80
    %v86 = vsel %vm85, %v80, %v84
    %v87 = vmul.f32 %v76, %v86
    %v88 = vmul.f32 %v79, %v86
    %v89 = vsub.f32 %v71, %v87
    %v90 = vsub.f32 %v72, %v88
    %v91 = vmul.f32 %v89, %v89
    %v92 = vmul.f32 %v90, %v90
    %v93 = vsel %vm73, %v91, 0.0
    %94 = vadd.xlane.f32.xlu0 %v93
    %v95 = vpop.xlane.xlu0 %94
    %v96 = vsel %vm73, %v92, 0.0
    %97 = vadd.xlane.f32.xlu0 %v96
    %v98 = vpop.xlane.xlu0 %97
    %v99 = vmul.f32 %v95, %v86
    %v100 = vmul.f32 %v98, %v86
    %v101 = vadd.f32 %v99, 1e-12
    %v102 = vadd.f32 %v100, 1e-12
    %v103 = vrsqrt.pop %v101
    %v104 = vmul.f32 %v103, %v101
    %v105 = vmul.f32 %v104, %v103
    %v106 = vmul.f32 0.5, %v105
    %v107 = vsub.f32 1.5, %v106
    %v108 = vmul.f32 %v103, %v107
    %vm109 = vweird.f32 %v101
    %vm110 = vweird.f32 %v103
    %vm111 = vmor %vm109, %vm110
    %v112 = vsel %vm111, %v103, %v108
    %v113 = vrsqrt.pop %v102
    %v114 = vmul.f32 %v113, %v102
    %v115 = vmul.f32 %v114, %v113
    %v116 = vmul.f32 0.5, %v115
    %v117 = vsub.f32 1.5, %v116
    %v118 = vmul.f32 %v113, %v117
    %vm119 = vweird.f32 %v102
    %vm120 = vweird.f32 %v113
    %vm121 = vmor %vm119, %vm120
    %v122 = vsel %vm121, %v113, %v118
    %v123 = vmul.f32 %v89, %v112
    %v124 = vmul.f32 %v90, %v122
    %v125 = vpack.c.bf16 %v124, %v123
    %v126 = vld [vmem:[#allocation5] sm:$0xf]
    %v127 = vld [vmem:[#allocation5 + $0x4] sm:$0xf]
    %v128 = vld [vmem:[#allocation5 + $0x8] sm:$0xf]
    %v129 = vld [vmem:[#allocation5 + $0xc] sm:$0xf]
    %v130 = vld [vmem:[%s2] sm:$0x1]
    %v132 = vperm.slane %v130, 0
    %v138 = vunpack.c.l.b16 %v126
    %v139 = vunpack.c.l.b16 %v127
    %v140 = vunpack.c.l.b16 %v128
    %v141 = vunpack.c.l.b16 %v129
    %v142 = vpack.c.b16 %v139, %v138
    %v143 = vpack.c.b16 %v141, %v140
    %v147 = vsel %vm73, %v125, 0
    %149 = vmatpush.bf16.msra.mxu0 0
    %150 = vmatpush.bf16.msra.mxu0 0
    %151 = vmatpush.bf16.msra.mxu0 0
    %152 = vmatpush.bf16.msra.mxu0 0
    %153 = vmatpush.bf16.msra.mxu0 0
    %154 = vmatpush.bf16.msra.mxu0 0
    %155 = vmatpush.bf16.msra.mxu0 %v143
    %156 = vmatpush.bf16.msra.mxu0 %v142
    %157 = vmatmul.bf16.gmra.mxu0 %v147
    %v158 = vpop.f32.mrf.mxu0
    %v159 = vadd.f32 %v132, %v158
    %v160 = vpop.f32.mrf.mxu0
    %v161 = vadd.f32 %v132, %v160
    %162 = vdwg.mxu0
    %v163 = vmul.f32 %v159, 0.5
    %v164 = vmul.f32 %v161, 0.5
    %v165 = vmul.f32 %v159, 0.044715
    %v166 = vmul.f32 %v161, 0.044715
    %v167 = vmul.f32 %v165, %v159
    %v168 = vmul.f32 %v166, %v161
    %v169 = vmul.f32 %v167, %v159
    %v170 = vmul.f32 %v168, %v161
    %v171 = vadd.f32 %v159, %v169
    %v172 = vadd.f32 %v161, %v170
    %v173 = vmul.f32 %v171, 0.7978846
    %v174 = vmul.f32 %v172, 0.7978846
    %v175 = vtanh.pop %v173
    %v176 = vtanh.pop %v174
    %v177 = vadd.f32 %v175, 1.0
    %v178 = vadd.f32 %v176, 1.0
    %v179 = vmul.f32 %v163, %v177
    %v180 = vmul.f32 %v164, %v178
    %v181 = vsel %vm73, %v179, 0.0
    %182 = vadd.xlane.f32.xlu0 %v181
    %v183 = vpop.xlane.xlu0 %182
    %v184 = vsel %vm73, %v180, 0.0
    %185 = vadd.xlane.f32.xlu0 %v184
    %v186 = vpop.xlane.xlu0 %185
    %v187 = vmul.f32 %v183, %v86
    %v188 = vmul.f32 %v186, %v86
    %v189 = vsub.f32 %v179, %v187
    %v190 = vsub.f32 %v180, %v188
    %v191 = vmul.f32 %v189, %v189
    %v192 = vmul.f32 %v190, %v190
    %v193 = vsel %vm73, %v191, 0.0
    %194 = vadd.xlane.f32.xlu0 %v193
    %v195 = vpop.xlane.xlu0 %194
    %v196 = vsel %vm73, %v192, 0.0
    %197 = vadd.xlane.f32.xlu0 %v196
    %v198 = vpop.xlane.xlu0 %197
    %v199 = vmul.f32 %v195, %v86
    %v200 = vmul.f32 %v198, %v86
    %v201 = vadd.f32 %v199, 1e-12
    %v202 = vadd.f32 %v200, 1e-12
    %v203 = vrsqrt.pop %v201
    %v204 = vmul.f32 %v203, %v201
    %v205 = vmul.f32 %v204, %v203
    %v206 = vmul.f32 0.5, %v205
    %v207 = vsub.f32 1.5, %v206
    %v208 = vmul.f32 %v203, %v207
    %vm209 = vweird.f32 %v201
    %vm210 = vweird.f32 %v203
    %vm211 = vmor %vm209, %vm210
    %v212 = vsel %vm211, %v203, %v208
    %v213 = vrsqrt.pop %v202
    %v214 = vmul.f32 %v213, %v202
    %v215 = vmul.f32 %v214, %v213
    %v216 = vmul.f32 0.5, %v215
    %v217 = vsub.f32 1.5, %v216
    %v218 = vmul.f32 %v213, %v217
    %vm219 = vweird.f32 %v202
    %vm220 = vweird.f32 %v213
    %vm221 = vmor %vm219, %vm220
    %v222 = vsel %vm221, %v213, %v218
    %v223 = vmul.f32 %v189, %v212
    %v224 = vmul.f32 %v190, %v222
    %v225 = vpack.c.bf16 %v224, %v223
    %v226 = vld [vmem:[#allocation7] sm:$0xf]
    %v227 = vld [vmem:[#allocation7 + $0x4] sm:$0xf]
    %v228 = vld [vmem:[#allocation7 + $0x8] sm:$0xf]
    %v229 = vld [vmem:[#allocation7 + $0xc] sm:$0xf]
    %v230 = vld [vmem:[%s4] sm:$0x1]
    %v232 = vperm.slane %v230, 0
    %v238 = vunpack.c.l.b16 %v226
    %v239 = vunpack.c.l.b16 %v227
    %v240 = vunpack.c.l.b16 %v228
    %v241 = vunpack.c.l.b16 %v229
    %v242 = vpack.c.b16 %v239, %v238
    %v243 = vpack.c.b16 %v241, %v240
    %v247 = vsel %vm73, %v225, 0
    %249 = vmatpush.bf16.msra.mxu0 0
    %250 = vmatpush.bf16.msra.mxu0 0
    %251 = vmatpush.bf16.msra.mxu0 0
    %252 = vmatpush.bf16.msra.mxu0 0
    %253 = vmatpush.bf16.msra.mxu0 0
    %254 = vmatpush.bf16.msra.mxu0 0
    %255 = vmatpush.bf16.msra.mxu0 %v243
    %256 = vmatpush.bf16.msra.mxu0 %v242
    %257 = vmatmul.bf16.gmra.mxu0 %v247
    %v258 = vpop.f32.mrf.mxu0
    %v259 = vadd.f32 %v232, %v258
    %v260 = vpop.f32.mrf.mxu0
    %v261 = vadd.f32 %v232, %v260
    %262 = vdwg.mxu0
    %263 = vst [vmem:[#allocation8] sm:$0xff] %v259
    %264 = vst [vmem:[#allocation8 + $0x8] sm:$0xff] %v261
    // Predicated region
    $region34: #{tpu_custom_call.1} parent=1 // pred_check
      _
    $region35: #{tpu_custom_call.1} parent=1 // pred_check_branch
      %266 = sbr.rel (0) target = $region37
    $region36: #{tpu_custom_call.1} parent=1 // pred_region
      %268 = vsyncadd [#allocation4], 0
      %s269 = sshll.u32 [#allocation8], 4
      %s270 = int_to_ptr.vmem [resolvable:$true] %s269
      %s271 = sshll.u32 %s5, 4
      %s272 = int_to_ptr.hbm [resolvable:$true] %s271
      %277 = dma.vmem_to_hbm [thread:$0]  %s270, 256, %s272, [#allocation4], 128, 128, 8
    $region37: #{tpu_custom_call.1} parent=1 // pred_fallthru
      _
    // Predicated region
    $region38: #{tpu_custom_call.1} parent=1 // pred_check
      _
    $region39: #{tpu_custom_call.1} parent=1 // pred_check_branch
      %279 = sbr.rel (0) target = $region41
    $region40: #{tpu_custom_call.1} parent=1 // pred_region
      %281 = dma.done [#allocation4], 256
    $region41: #{tpu_custom_call.1} parent=1 // pred_fallthru
      _
    %282 = vsyncpa [#allocation3], 1
    %283 = vsyncpa [#allocation6], 1
    %284 = vsyncpa [#allocation4], 1

</llo_original>
